<compile_context>
chip_gen: v7x
topology: tpu7x:2x2x1
jax: 0.10.0
libtpu: 0.0.40
codegen_flags: <defaults>
</compile_context>

<pallas_src>
import jax
import jax.numpy as jnp
from jax.experimental import pallas as pl
from jax.experimental.pallas import tpu as pltpu


def _round_up(v, m):
    return (v + m - 1) // m * m


def _vmem_capacity_bytes():
    """Physical per-TensorCore VMEM; falls back to the smallest (v7x) value."""
    try:
        return int(pltpu.get_tpu_info().vmem_capacity_bytes)
    except Exception:
        return 64 * 1024 * 1024


def _patch_embed_kernel(rows_ref, wt_ref, pos_ref, out_ref):
    # rows_ref: (TM, K)   compute dtype -- flat patch rows (row 0 / image == 0)
    # wt_ref:   (K, Ep)   compute dtype -- flattened conv weight (resident)
    # pos_ref:  (TM, Ep)  f32 -- [cls+pos0 ; pos[1:]+bias ; 0-pad] (resident)
    # out_ref:  (TM, Ep)  out dtype -- all N+1 token rows, lane-dense stores
    y = jnp.dot(rows_ref[...], wt_ref[...],
                preferred_element_type=jnp.float32)        # MXU, f32 accumulate
    out_ref[...] = (y + pos_ref[...]).astype(out_ref.dtype)


def embed_layer_forward(x, conv_w, conv_b, cls_token, pos_embedding, patch_size,
                        *, use_bf16_inputs=True):
    """x: (B, C, H, W) float32 (NCHW, like PyTorch). Returns (B, N+1, E)."""
    B, C, H, W = x.shape
    E = conv_w.shape[0]
    P = patch_size
    Hp, Wp = H // P, W // P
    N = Hp * Wp
    K = C * P * P
    N1 = N + 1                               # tokens per image incl. cls

    compute_dtype = jnp.bfloat16 if use_bf16_inputs else jnp.float32
    out_dtype = compute_dtype                # bf16 stores halve output traffic
    in_isz = jnp.dtype(compute_dtype).itemsize
    out_isz = jnp.dtype(out_dtype).itemsize

    # --- padded / aligned sizes -------------------------------------------
    sublane = 16 if in_isz == 2 else 8        # bf16 packs 16 rows per vreg
    N1_pad = _round_up(N1, sublane)           # token rows per image
    Ep = _round_up(E, 128)                    # embed dim, lane aligned
    # K is NOT zero-padded: a (TM, K) block whose minor dim equals the full
    # array dim is legal, and padding would double patch HBM bytes for small K.

    # --- images per grid step: ~2048 rows, VMEM- and megacore-aware ---------
    vmem_cap = _vmem_capacity_bytes()
    vmem_limit = max(32 << 20, min(vmem_cap * 3 // 4, 96 << 20))  # 48 MiB v7x / 96 MiB v5e-v6e
    tile_budget = int(vmem_limit * 0.8)       # headroom for Mosaic scratch
    # conservative: everything double-buffered (weight/pos could be Buffered(1))
    per_row = 2 * K * in_isz + 2 * Ep * out_isz + 2 * Ep * 4
    fixed = 2 * K * Ep * in_isz
    max_rows = max(N1_pad, (tile_budget - fixed) // per_row)
    G = max(1, min(B, 2048 // N1_pad, max_rows // N1_pad))
    if B >= 2:
        G = max(1, min(G, B // 2))            # keep grid >= 2 for v7x megacore
    while B % G != 0:                         # G must divide B
        G -= 1
    TM = G * N1_pad
    M_pad = B * N1_pad

    # --- patch extraction: ONE fused cast->transpose->pad materialization ---
    # leading zero row per image = cls slot (contributes 0 to the matmul);
    # trailing rows pad N1 -> N1_pad.  Cast happens before the relayout so the
    # materialized patch tensor and its re-read are already in compute dtype.
    rows = (x.astype(compute_dtype)
              .reshape(B, C, Hp, P, Wp, P)
              .transpose(0, 2, 4, 1, 3, 5)     # (B, Hp, Wp, C, P, P)
              .reshape(B, N, K))
    rows = jnp.pad(rows, ((0, 0), (1, N1_pad - N1), (0, 0))).reshape(M_pad, K)

    # conv weight (E, C, P, P) -> (K, E), lane-padded to (K, Ep)
    wt = conv_w.reshape(E, K).T.astype(compute_dtype)
    wt = jnp.pad(wt, ((0, 0), (0, Ep - E)))

    # per-token additive table (f32, batch-invariant), exactly one (TM, Ep)
    # block with a constant index map -> fetched once, VMEM resident:
    #   row 0         : cls_token + pos_embedding[:, 0]   (patch row is zero)
    #   rows 1..N     : pos_embedding[:, 1:] + conv_bias
    #   rows N1..pad  : zero (stripped afterwards)
    pos_img = jnp.concatenate(
        [(cls_token[0] + pos_embedding[:, 0, :]).astype(jnp.float32),       # (1, E)
         (pos_embedding[0, 1:, :] + conv_b[None, :]).astype(jnp.float32)],  # (N, E)
        axis=0)
    pos_img = jnp.pad(pos_img, ((0, N1_pad - N1), (0, Ep - E)))             # (N1_pad, Ep)
    pos_tile = jnp.tile(pos_img, (G, 1))                                    # (TM, Ep)

    cost = pl.CostEstimate(
        flops=2 * M_pad * K * Ep,
        transcendentals=0,
        bytes_accessed=(M_pad * K * in_isz       # patch rows in
                        + K * Ep * in_isz        # weight in (resident)
                        + TM * Ep * 4            # pos table in (resident)
                        + M_pad * Ep * out_isz), # tokens out
    )

    out = pl.pallas_call(
        _patch_embed_kernel,
        out_shape=jax.ShapeDtypeStruct((M_pad, Ep), out_dtype),
        grid_spec=pltpu.PrefetchScalarGridSpec(
            num_scalar_prefetch=0,
            grid=(M_pad // TM,),
            in_specs=[
                pl.BlockSpec((TM, K), lambda m: (m, 0)),    # patch rows
                pl.BlockSpec((K, Ep), lambda m: (0, 0)),    # weight (resident)
                pl.BlockSpec((TM, Ep), lambda m: (0, 0)),   # cls/pos+bias (resident)
            ],
            out_specs=pl.BlockSpec((TM, Ep), lambda m: (m, 0)),
        ),
        compiler_params=pltpu.CompilerParams(
            dimension_semantics=("parallel",),
            vmem_limit_bytes=vmem_limit,
        ),
        cost_estimate=cost,
    )(rows, wt, pos_tile)

    # strip padding; the kernel already emitted all N+1 rows (cls included).
    return out.reshape(B, N1_pad, Ep)[:, :N1, :E]


def _reference(x, conv_w, conv_b, cls_token, pos_embedding, patch_size):
    """Pure-JAX reference mirroring the PyTorch EmbedLayer.forward."""
    y = jax.lax.conv_general_dilated(
        x, conv_w,
        window_strides=(patch_size, patch_size),
        padding="VALID",
        dimension_numbers=("NCHW", "OIHW", "NCHW"),
    ) + conv_b[None, :, None, None]
    B, E = y.shape[0], y.shape[1]
    y = y.reshape(B, E, -1).transpose(0, 2, 1)                 # (B, N, E)
    cls = jnp.broadcast_to(cls_token, (B, 1, E))
    y = jnp.concatenate([cls, y], axis=1)
    return y + pos_embedding


if __name__ == "__main__":
    # Small config: n_channels=4, img_size=16, patch_size=4, embed_dim=32
    B, C, H, W = 2, 4, 16, 16
    P, E = 4, 32
    N = (H // P) * (W // P)

    key = jax.random.PRNGKey(0)
    k1, k2, k3, k4, k5 = jax.random.split(key, 5)
    x = jax.random.normal(k1, (B, C, H, W), dtype=jnp.float32)
    conv_w = jax.random.normal(k2, (E, C, P, P), dtype=jnp.float32) * 0.05
    conv_b = jax.random.normal(k3, (E,), dtype=jnp.float32) * 0.05
    cls_token = jax.random.uniform(k4, (1, 1, E), dtype=jnp.float32)
    pos_embedding = jax.random.uniform(k5, (1, N + 1, E), dtype=jnp.float32)

    ref = _reference(x, conv_w, conv_b, cls_token, pos_embedding, P)

    # f32 path: exact (modulo accumulation order) vs the conv reference.
    out_f32 = embed_layer_forward(x, conv_w, conv_b, cls_token, pos_embedding, P,
                                  use_bf16_inputs=False)
    out_f32 = jax.block_until_ready(out_f32)
    assert out_f32.shape == (B, N + 1, E)
    assert out_f32.dtype == jnp.float32
    assert jnp.allclose(out_f32, ref, atol=1e-4, rtol=1e-4), "f32 mismatch vs reference"

    # bf16 path (MXU-native on v6e/v7x), f32 accumulation, bf16 stores.
    out_bf16 = embed_layer_forward(x, conv_w, conv_b, cls_token, pos_embedding, P,
                                   use_bf16_inputs=True)
    out_bf16 = jax.block_until_ready(out_bf16)
    assert out_bf16.shape == (B, N + 1, E)
    assert jnp.allclose(out_bf16.astype(jnp.float32), ref,
                        atol=5e-2, rtol=5e-2), "bf16 mismatch vs reference"

    print("KERNEL_OK")
</pallas_src>

<mosaic_0001>
module attributes {stable_mosaic.version = 11 : i64} {
  func.func @_patch_embed_kernel(%arg0: i32, %arg1: memref<24x64xf32, #tpu.memory_space<vmem>>, %arg2: memref<64x128xf32, #tpu.memory_space<vmem>>, %arg3: memref<24x128xf32, #tpu.memory_space<vmem>>, %arg4: memref<24x128xf32, #tpu.memory_space<vmem>>) attributes {dimension_semantics = [#tpu.dimension_semantics<parallel>], iteration_bounds = array<i64: 2>, scalar_prefetch = 0 : i64, scratch_operands = 0 : i64, tpu.core_type = #tpu.core_type<tc>, window_params = [{transform_indices = @transform_0, window_bounds = array<i64: 24, 64>}, {pipeline_mode = #tpu.pipeline_mode<synchronous>, transform_indices = @transform_1, window_bounds = array<i64: 64, 128>}, {pipeline_mode = #tpu.pipeline_mode<synchronous>, transform_indices = @transform_2, window_bounds = array<i64: 24, 128>}, {transform_indices = @transform_3, window_bounds = array<i64: 24, 128>}]} {
    %c0 = arith.constant 0 : index
    %c0_0 = arith.constant 0 : index
    %0 = vector.load %arg1[%c0, %c0_0] : memref<24x64xf32, #tpu.memory_space<vmem>>, vector<24x64xf32>
    %c0_1 = arith.constant 0 : index
    %c0_2 = arith.constant 0 : index
    %1 = vector.load %arg2[%c0_1, %c0_2] : memref<64x128xf32, #tpu.memory_space<vmem>>, vector<64x128xf32>
    %cst = arith.constant dense<0.000000e+00> : vector<24x128xf32>
    %2 = tpu.matmul %0, %1, %cst {dimension_numbers = #tpu.dot_dimension_numbers<[1], [0], [0], [1], [0, 0, 1, 1], [], []>} : vector<24x64xf32>, vector<64x128xf32>, vector<24x128xf32> -> vector<24x128xf32>
    %c0_3 = arith.constant 0 : index
    %c0_4 = arith.constant 0 : index
    %3 = vector.load %arg3[%c0_3, %c0_4] : memref<24x128xf32, #tpu.memory_space<vmem>>, vector<24x128xf32>
    %4 = arith.addf %2, %3 : vector<24x128xf32>
    %c0_5 = arith.constant 0 : index
    %c0_6 = arith.constant 0 : index
    %5 = vector.load %arg4[%c0_5, %c0_6] : memref<24x128xf32, #tpu.memory_space<vmem>>, vector<24x128xf32>
    tpu.vector_store %arg4[%c0_5, %c0_6], %4 {strides = array<i32>} : memref<24x128xf32, #tpu.memory_space<vmem>>, vector<24x128xf32>,
    return
  }
  func.func @transform_0(%arg0: i32) -> (i32, i32) {
    %c0_i32 = arith.constant 0 : i32
    %c0_i32_0 = arith.constant 0 : i32
    return %arg0, %c0_i32 : i32, i32
  }
  func.func @transform_1(%arg0: i32) -> (i32, i32) {
    %c0_i32 = arith.constant 0 : i32
    %c0_i32_0 = arith.constant 0 : i32
    %c0_i32_1 = arith.constant 0 : i32
    return %c0_i32, %c0_i32_0 : i32, i32
  }
  func.func @transform_2(%arg0: i32) -> (i32, i32) {
    %c0_i32 = arith.constant 0 : i32
    %c0_i32_0 = arith.constant 0 : i32
    %c0_i32_1 = arith.constant 0 : i32
    return %c0_i32, %c0_i32_0 : i32, i32
  }
  func.func @transform_3(%arg0: i32) -> (i32, i32) {
    %c0_i32 = arith.constant 0 : i32
    %c0_i32_0 = arith.constant 0 : i32
    return %arg0, %c0_i32 : i32, i32
  }
}

</mosaic_0001>

<llo_original>
// kernel: tpu_custom_call.1
$region0: #{tpu_custom_call.1}
  #allocation0 [shape = 'u32[]', space=smem, size = 0x4, offset = 0x4, fixed_abs, tag = 'smem constant byte address 0x4 - core index']
  #allocation1 [shape = 'u32[144,128]{1,0:T(1,128)}', space=vmem, size = 0x12000, scoped, tag = 'internal scratch']
  %s0 = inlined_call_operand.hbm [shape: f32[48,64], index: 0, kind: input, shape index: {}]
  %s1 = inlined_call_operand.hbm [shape: f32[64,128], index: 1, kind: input, shape index: {}]
  %s2 = inlined_call_operand.hbm [shape: f32[24,128], index: 2, kind: input, shape index: {}]
  %s3 = inlined_call_operand.hbm [shape: f32[48,128], index: 3, kind: output, shape index: {}]
  %s4 = sld [smem:[#allocation0]]
  $region57: #{tpu_custom_call.1} parent=0
    _
  %s6 = ssub.s32 1, %s4
  %s7 = scalar_select 0, %s6, %s4
  $region1: #{tpu_custom_call.1} parent=0
    #allocation2 [shape = 'u8[24576]{0}', space=vmem, size = 0x6000, scoped, tag = 'input window, operand 0']
    #allocation3 [shape = 's32[2]{0}', space=sflag, size = 0x8, scoped, tag = 'scoped memory for tpu_custom_call.1']
    #allocation4 [shape = 's32[2]{0}', space=sflag, size = 0x8, scoped, tag = 'scoped memory for tpu_custom_call.1']
    #allocation5 [shape = 'u8[32768]{0}', space=vmem, size = 0x8000, scoped, tag = 'input window, operand 1, single buffered']
    #allocation6 [shape = 's32[1]{0}', space=sflag, size = 0x4, scoped, tag = 'scoped memory for tpu_custom_call.1']
    #allocation7 [shape = 'u8[12288]{0}', space=vmem, size = 0x3000, scoped, tag = 'input window, operand 2, single buffered']
    #allocation8 [shape = 'u8[24576]{0}', space=vmem, size = 0x6000, scoped, tag = 'output window, operand 0']
    %8 = vsyncpa [#allocation3], 0
    %s9 = scalar_lea.sflag [#allocation3], 1
    %10 = vsyncpa %s9, 0
    %11 = vsyncpa [#allocation6], 0
    %12 = vsyncpa [#allocation4], 0
    %s13 = scalar_lea.sflag [#allocation4], 1
    %14 = vsyncpa %s13, 0
    loop: start=0, step=1, limit=4
    $region2: #{tpu_custom_call.1} parent=1 // loop_pre_header
      _
    $region3: #{tpu_custom_call.1} parent=1 // loop_header
      %s16 = sphi 0, %s20
      %p17 = scmp.ge.s32.totalorder %s16, 4
      %s26 = sphi 0, %s28
      %s29 = sphi 0, %s26
      %s30 = sphi 0, %s29
      %s46 = sphi 0, %s30
      %s50 = sphi 0, %s50
      %s52 = sphi 0, %s50
      %s53 = sphi 0, %s52
      %s67 = sphi 0, %s53
      %s71 = sphi 0, %s71
      %s73 = sphi 0, %s71
      %s74 = sphi 0, %s73
      %s88 = sphi 0, %s74
      %s94 = sphi 0, %s96
      %s97 = sphi 0, %s94
      %s98 = sphi 0, %s97
      %s114 = sphi 0, %s98
    $region4: #{tpu_custom_call.1} parent=1 // loop_header_branch
      %19 = sbr.rel (%p17) target = $region8
    $region5: #{tpu_custom_call.1} parent=1 // loop_body
      %s21 = ssub.s32 %s16, 1
      %s22 = ssub.s32 %s16, 2
      %s23 = sadd.s32 %s16, 1
      %s24 = ssub.s32 %s16, %s23
      %p25 = scmp.eq.s32.totalorder %s24, 0
      %s27 = sadd.s32 %s26, 1
      %s28 = scalar_select %p25, %s26, %s27
      %p31 = pneg %p25
      %p32 = scmp.eq.s32.totalorder %s16, 1
      %p33 = por %p31, %p32
      %p34 = scmp.ne.s32.totalorder %s26, %s29
      %p35 = scmp.eq.s32.totalorder %s16, 0
      %p36 = por %p34, %p35
      %p37 = scmp.ne.s32.totalorder %s26, %s29
      %p38 = scmp.eq.s32.totalorder %s21, 1
      %p39 = por %p37, %p38
      %p40 = scmp.ne.s32.totalorder %s29, %s30
      %p41 = scmp.eq.s32.totalorder %s21, 0
      %p42 = por %p40, %p41
      %p43 = scmp.ne.s32.totalorder %s29, %s30
      %p44 = scmp.eq.s32.totalorder %s22, 1
      %p45 = por %p43, %p44
      %p47 = scmp.ne.s32.totalorder %s30, %s46
      %p48 = scmp.eq.s32.totalorder %s22, 0
      %p49 = por %p47, %p48
      %s51 = sadd.s32 %s50, 1
      %p54 = scmp.eq.s32.totalorder %s16, 1
      %p55 = scmp.ne.s32.totalorder %s50, %s52
      %p56 = scmp.eq.s32.totalorder %s16, 0
      %p57 = por %p55, %p56
      %p58 = scmp.ne.s32.totalorder %s50, %s52
      %p59 = scmp.eq.s32.totalorder %s21, 1
      %p60 = por %p58, %p59
      %p61 = scmp.ne.s32.totalorder %s52, %s53
      %p62 = scmp.eq.s32.totalorder %s21, 0
      %p63 = por %p61, %p62
      %p64 = scmp.ne.s32.totalorder %s52, %s53
      %p65 = scmp.eq.s32.totalorder %s22, 1
      %p66 = por %p64, %p65
      %p68 = scmp.ne.s32.totalorder %s53, %s67
      %p69 = scmp.eq.s32.totalorder %s22, 0
      %p70 = por %p68, %p69
      %s72 = sadd.s32 %s71, 1
      %p75 = scmp.eq.s32.totalorder %s16, 1
      %p76 = scmp.ne.s32.totalorder %s71, %s73
      %p77 = scmp.eq.s32.totalorder %s16, 0
      %p78 = por %p76, %p77
      %p79 = scmp.ne.s32.totalorder %s71, %s73
      %p80 = scmp.eq.s32.totalorder %s21, 1
      %p81 = por %p79, %p80
      %p82 = scmp.ne.s32.totalorder %s73, %s74
      %p83 = scmp.eq.s32.totalorder %s21, 0
      %p84 = por %p82, %p83
      %p85 = scmp.ne.s32.totalorder %s73, %s74
      %p86 = scmp.eq.s32.totalorder %s22, 1
      %p87 = por %p85, %p86
      %p89 = scmp.ne.s32.totalorder %s74, %s88
      %p90 = scmp.eq.s32.totalorder %s22, 0
      %p91 = por %p89, %p90
      %s92 = ssub.s32 %s16, %s23
      %p93 = scmp.eq.s32.totalorder %s92, 0
      %s95 = sadd.s32 %s94, 1
      %s96 = scalar_select %p93, %s94, %s95
      %p99 = pneg %p93
      %p100 = scmp.eq.s32.totalorder %s16, 1
      %p101 = por %p99, %p100
      %p102 = scmp.ne.s32.totalorder %s94, %s97
      %p103 = scmp.eq.s32.totalorder %s16, 0
      %p104 = por %p102, %p103
      %p105 = scmp.ne.s32.totalorder %s94, %s97
      %p106 = scmp.eq.s32.totalorder %s21, 1
      %p107 = por %p105, %p106
      %p108 = scmp.ne.s32.totalorder %s97, %s98
      %p109 = scmp.eq.s32.totalorder %s21, 0
      %p110 = por %p108, %p109
      %p111 = scmp.ne.s32.totalorder %s97, %s98
      %p112 = scmp.eq.s32.totalorder %s22, 1
      %p113 = por %p111, %p112
      %p115 = scmp.ne.s32.totalorder %s98, %s114
      %p116 = scmp.eq.s32.totalorder %s22, 0
      %p117 = por %p115, %p116
      %p118 = scmp.le.s32.totalorder 1, %s16
      %p119 = scmp.lt.s32.totalorder %s16, 3
      %p120 = pnand %p118, %p119
      %p121 = pneg %p120
      // Predicated region
      $region9: #{tpu_custom_call.1} parent=5 // pred_check
        _
      $region10: #{tpu_custom_call.1} parent=5 // pred_check_branch
        %123 = sbr.rel (%p120) target = $region12
      $region11: #{tpu_custom_call.1} parent=5 // pred_region
        %s124 = ssub.s32 %s16, 1
        // Predicated region
        $region13: #{tpu_custom_call.1} parent=11 // pred_check
          %p125 = pneg %p63
        $region14: #{tpu_custom_call.1} parent=11 // pred_check_branch
          %127 = sbr.rel (%p125) target = $region16
        $region15: #{tpu_custom_call.1} parent=11 // pred_region
          %s129 = ssub.s32 1024, 1024
          %130 = vsyncadd [#allocation6], %s129
          %s131 = sshll.u32 [#allocation5], 4
          %s132 = int_to_ptr.vmem [resolvable:$true] %s131
          %137 = dma.hbm_to_vmem [thread:$0]  %s1, 1024, %s132, [#allocation6], 128, 128, 8
        $region16: #{tpu_custom_call.1} parent=11 // pred_fallthru
          _
        // Predicated region
        $region17: #{tpu_custom_call.1} parent=11 // pred_check
          %p138 = pneg %p84
        $region18: #{tpu_custom_call.1} parent=11 // pred_check_branch
          %140 = sbr.rel (%p138) target = $region20
        $region19: #{tpu_custom_call.1} parent=11 // pred_region
          %s142 = ssub.s32 384, 384
          %143 = vsyncadd [#allocation6], %s142
          %s144 = sshll.u32 [#allocation7], 4
          %s145 = int_to_ptr.vmem [resolvable:$true] %s144
          %150 = dma.hbm_to_vmem [thread:$0]  %s2, 384, %s145, [#allocation6], 128, 128, 8
        $region20: #{tpu_custom_call.1} parent=11 // pred_fallthru
          _
      $region12: #{tpu_custom_call.1} parent=5 // pred_fallthru
        _
      %p151 = scmp.lt.s32.totalorder %s16, 2
      // Predicated region
      $region21: #{tpu_custom_call.1} parent=5 // pred_check
        %p152 = pneg %p151
      $region22: #{tpu_custom_call.1} parent=5 // pred_check_branch
        %154 = sbr.rel (%p152) target = $region24
      $region23: #{tpu_custom_call.1} parent=5 // pred_region
        // Predicated region
        $region25: #{tpu_custom_call.1} parent=23 // pred_check
          %p155 = pneg %p36
        $region26: #{tpu_custom_call.1} parent=23 // pred_check_branch
          %157 = sbr.rel (%p155) target = $region28
        $region27: #{tpu_custom_call.1} parent=23 // pred_region
          %s158 = sand.u32 %s26, 1
          %s159 = scalar_lea.sflag [#allocation3], %s158
          %s160 = sand.u32 %s26, 1
          %s161 = smul.addr %s160, 24
          %s162 = scalar_lea.vmem [#allocation2], %s161
          %s163 = smul.u32 3, %s16
          %s165 = ssub.s32 384, 384
          %166 = vsyncadd %s159, %s165
          %s167 = smul.addr %s163, 128
          %s168 = scalar_lea.hbm %s0, %s167
          %s169 = sshll.u32 %s162, 4
          %s170 = int_to_ptr.vmem [resolvable:$true] %s169
          %175 = dma.hbm_to_vmem [thread:$0]  %s168, 384, %s170, %s159, 128, 128, 8
        $region28: #{tpu_custom_call.1} parent=23 // pred_fallthru
          _
      $region24: #{tpu_custom_call.1} parent=5 // pred_fallthru
        _
      %p176 = scmp.le.s32.totalorder 1, %s16
      %p177 = scmp.lt.s32.totalorder %s16, 3
      %p178 = pnand %p176, %p177
      %p179 = pneg %p178
      // Predicated region
      $region29: #{tpu_custom_call.1} parent=5 // pred_check
        _
      $region30: #{tpu_custom_call.1} parent=5 // pred_check_branch
        %181 = sbr.rel (%p178) target = $region32
      $region31: #{tpu_custom_call.1} parent=5 // pred_region
        %s182 = ssub.s32 %s16, 1
        %s183 = sand.u32 %s29, 1
        %s184 = scalar_lea.sflag [#allocation3], %s183
        %s185 = sand.u32 %s29, 1
        %s186 = smul.addr %s185, 24
        %s187 = scalar_lea.vmem [#allocation2], %s186
        // Predicated region
        $region33: #{tpu_custom_call.1} parent=31 // pred_check
          %p188 = pneg %p42
        $region34: #{tpu_custom_call.1} parent=31 // pred_check_branch
          %190 = sbr.rel (%p188) target = $region36
        $region35: #{tpu_custom_call.1} parent=31 // pred_region
          %191 = dma.done %s184, 384
        $region36: #{tpu_custom_call.1} parent=31 // pred_fallthru
          _
        // Predicated region
        $region37: #{tpu_custom_call.1} parent=31 // pred_check
          %p192 = pneg %p63
        $region38: #{tpu_custom_call.1} parent=31 // pred_check_branch
          %194 = sbr.rel (%p192) target = $region40
        $region39: #{tpu_custom_call.1} parent=31 // pred_region
          %195 = dma.done [#allocation6], 1024
        $region40: #{tpu_custom_call.1} parent=31 // pred_fallthru
          _
        // Predicated region
        $region41: #{tpu_custom_call.1} parent=31 // pred_check
          %p196 = pneg %p84
        $region42: #{tpu_custom_call.1} parent=31 // pred_check_branch
          %198 = sbr.rel (%p196) target = $region44
        $region43: #{tpu_custom_call.1} parent=31 // pred_region
          %199 = dma.done [#allocation6], 384
        $region44: #{tpu_custom_call.1} parent=31 // pred_fallthru
          _
        %s200 = sand.u32 %s29, 1
        %s201 = scalar_lea.sflag [#allocation3], %s200
        %s202 = sand.u32 %s29, 1
        %s203 = smul.addr %s202, 24
        %s204 = scalar_lea.vmem [#allocation2], %s203
        %p205 = pneg %p42
        %p206 = pneg %p39
        %p207 = pneg %p63
        %p208 = pneg %p60
        %p209 = pneg %p84
        %p210 = pneg %p81
        %p211 = pneg %p110
        %p212 = pneg %p107
        %s213 = sand.u32 %s97, 1
        %s214 = scalar_lea.sflag [#allocation4], %s213
        %s215 = sand.u32 %s97, 1
        %s216 = smul.addr %s215, 24
        %s217 = scalar_lea.vmem [#allocation8], %s216
        %s218 = smul.u32 3, %s21
        %s219 = smul.u32 3, %s21
        %v220 = vld [vmem:[%s187] sm:$0xff]
        %v221 = vld [vmem:[%s187 + $0x8] sm:$0xff]
        %v222 = vld [vmem:[%s187 + $0x10] sm:$0xff]
        %v223 = vld [vmem:[#allocation5] sm:$0xff]
        %v224 = vld [vmem:[#allocation5 + $0x8] sm:$0xff]
        %v225 = vld [vmem:[#allocation5 + $0x10] sm:$0xff]
        %v226 = vld [vmem:[#allocation5 + $0x18] sm:$0xff]
        %v227 = vld [vmem:[#allocation5 + $0x20] sm:$0xff]
        %v228 = vld [vmem:[#allocation5 + $0x28] sm:$0xff]
        %v229 = vld [vmem:[#allocation5 + $0x30] sm:$0xff]
        %v230 = vld [vmem:[#allocation5 + $0x38] sm:$0xff]
        %v231 = vld [vmem:[#allocation7] sm:$0xff]
        %v232 = vld [vmem:[#allocation7 + $0x8] sm:$0xff]
        %v233 = vld [vmem:[#allocation7 + $0x10] sm:$0xff]
        %vm234 = vcmask 523264
        %v236 = vsel %vm234, %v220, 0
        %v239 = vsel %vm234, %v221, 0
        %v242 = vsel %vm234, %v222, 0
        %244 = vmatprep.subr.mxu0 0.0
        %245 = vmatpush1.msra.mxu0 %v223
        %246 = vmatprep.subr.mxu0 0.0
        %247 = vmatpush1.msra.mxu0 %v224
        %248 = vmatprep.subr.mxu0 0.0
        %249 = vmatpush1.msra.mxu0 %v225
        %250 = vmatprep.subr.mxu0 0.0
        %251 = vmatpush1.msra.mxu0 %v226
        %252 = vmatprep.subr.mxu0 0.0
        %253 = vmatpush1.msra.mxu0 %v227
        %254 = vmatprep.subr.mxu0 0.0
        %255 = vmatpush1.msra.mxu0 %v228
        %256 = vmatprep.subr.mxu0 0.0
        %257 = vmatpush1.msra.mxu0 %v229
        %258 = vmatprep.subr.mxu0 0.0
        %259 = vmatpush1.msra.mxu0 %v230
        %260 = vmatprep.subr.mxu0 0.0
        %261 = vmatpush1.msra.mxu0 0.0
        %262 = vmatprep.subr.mxu0 0.0
        %263 = vmatpush1.msra.mxu0 0.0
        %264 = vmatprep.subr.mxu0 0.0
        %265 = vmatpush1.msra.mxu0 0.0
        %266 = vmatprep.subr.mxu0 0.0
        %267 = vmatpush1.msra.mxu0 0.0
        %268 = vmatprep.subr.mxu0 0.0
        %269 = vmatpush1.msra.mxu0 0.0
        %270 = vmatprep.subr.mxu0 0.0
        %271 = vmatpush1.msra.mxu0 0.0
        %272 = vmatprep.subr.mxu0 0.0
        %273 = vmatpush1.msra.mxu0 0.0
        %274 = vmatprep.subr.mxu0 0.0
        %275 = vmatpush1.msra.mxu0 0.0
        %276 = vmatprep.subr.mxu0 0.0
        %277 = vmatpush1.msra.mxu0 0.0
        %278 = vmatprep.subr.mxu0 0.0
        %279 = vmatpush1.msra.mxu0 0.0
        %280 = vmatprep.subr.mxu0 0.0
        %281 = vmatpush1.msra.mxu0 0.0
        %282 = vmatprep.subr.mxu0 0.0
        %283 = vmatpush1.msra.mxu0 0.0
        %284 = vmatprep.subr.mxu0 0.0
        %285 = vmatpush1.msra.mxu0 0.0
        %286 = vmatprep.subr.mxu0 0.0
        %287 = vmatpush1.msra.mxu0 0.0
        %288 = vmatprep.subr.mxu0 0.0
        %289 = vmatpush1.msra.mxu0 0.0
        %290 = vmatprep.subr.mxu0 0.0
        %291 = vmatpush1.msra.mxu0 0.0
        %292 = vmatprep.subr.mxu0 0.0
        %293 = vmatpush1.msra.mxu0 0.0
        %294 = vmatprep.subr.mxu0 0.0
        %295 = vmatpush1.msra.mxu0 0.0
        %296 = vmatprep.subr.mxu0 0.0
        %297 = vmatpush1.msra.mxu0 0.0
        %298 = vmatprep.subr.mxu0 0.0
        %299 = vmatpush1.msra.mxu0 0.0
        %300 = vmatprep.subr.mxu0 0.0
        %301 = vmatpush1.msra.mxu0 0.0
        %302 = vmatprep.subr.mxu0 0.0
        %303 = vmatpush1.msra.mxu0 0.0
        %304 = vmatprep.subr.mxu0 0.0
        %305 = vmatpush1.msra.mxu0 0.0
        %306 = vmatprep.subr.mxu0 0.0
        %307 = vmatpush1.msra.mxu0 0.0
        %308 = vmatprep.mubr.f32.mxu0 0.0
        %309 = vmatmul.mubr.f32.gmra.mrb[0].mxu0 %v236
        %v310 = vpop.f32.mrb[0].mxu0
        %v311 = vadd.f32 %v231, %v310
        %v312 = vpop.f32.mrb[0].mxu0
        %313 = vmatprep.mubr.f32.mxu0 0.0
        %314 = vmatmul.mubr.f32.gmra.mrb[0].mxu0 %v239
        %v315 = vpop.f32.mrb[0].mxu0
        %v316 = vadd.f32 %v232, %v315
        %v317 = vpop.f32.mrb[0].mxu0
        %318 = vmatprep.mubr.f32.mxu0 0.0
        %319 = vmatmul.mubr.f32.gmra.mrb[0].mxu0 %v242
        %v320 = vpop.f32.mrb[0].mxu0
        %v321 = vadd.f32 %v233, %v320
        %v322 = vpop.f32.mrb[0].mxu0
        %323 = vdwg.mxu0
        %324 = vst [vmem:[%s217] sm:$0xff] %v311
        %325 = vst [vmem:[%s217 + $0x8] sm:$0xff] %v316
        %326 = vst [vmem:[%s217 + $0x10] sm:$0xff] %v321
        %s327 = sand.u32 %s97, 1
        %s328 = scalar_lea.sflag [#allocation4], %s327
        %s329 = sand.u32 %s97, 1
        %s330 = smul.addr %s329, 24
        %s331 = scalar_lea.vmem [#allocation8], %s330
        // Predicated region
        $region45: #{tpu_custom_call.1} parent=31 // pred_check
          %p332 = pneg %p107
        $region46: #{tpu_custom_call.1} parent=31 // pred_check_branch
          %334 = sbr.rel (%p332) target = $region48
        $region47: #{tpu_custom_call.1} parent=31 // pred_region
          %s335 = smul.u32 3, %s21
          %s337 = ssub.s32 384, 384
          %338 = vsyncadd %s328, %s337
          %s339 = smul.addr %s335, 128
          %s340 = scalar_lea.hbm %s3, %s339
          %s341 = sshll.u32 %s331, 4
          %s342 = int_to_ptr.vmem [resolvable:$true] %s341
          %347 = dma.vmem_to_hbm [thread:$0]  %s342, 384, %s340, %s328, 128, 128, 8
        $region48: #{tpu_custom_call.1} parent=31 // pred_fallthru
          _
      $region32: #{tpu_custom_call.1} parent=5 // pred_fallthru
        _
      %p348 = scmp.le.s32.totalorder 2, %s16
      // Predicated region
      $region49: #{tpu_custom_call.1} parent=5 // pred_check
        %p349 = pneg %p348
      $region50: #{tpu_custom_call.1} parent=5 // pred_check_branch
        %351 = sbr.rel (%p349) target = $region52
      $region51: #{tpu_custom_call.1} parent=5 // pred_region
        %s352 = ssub.s32 %s16, 2
        // Predicated region
        $region53: #{tpu_custom_call.1} parent=51 // pred_check
          %p353 = pneg %p113
        $region54: #{tpu_custom_call.1} parent=51 // pred_check_branch
          %355 = sbr.rel (%p353) target = $region56
        $region55: #{tpu_custom_call.1} parent=51 // pred_region
          %s356 = sand.u32 %s98, 1
          %s357 = scalar_lea.sflag [#allocation4], %s356
          %s358 = sand.u32 %s98, 1
          %s359 = smul.addr %s358, 24
          %s360 = scalar_lea.vmem [#allocation8], %s359
          %361 = dma.done %s357, 384
        $region56: #{tpu_custom_call.1} parent=51 // pred_fallthru
          _
      $region52: #{tpu_custom_call.1} parent=5 // pred_fallthru
        _
    $region6: #{tpu_custom_call.1} parent=1 // loop_footer
      %s20 = sadd.s32 1, %s16
    $region7: #{tpu_custom_call.1} parent=1 // loop_footer_branch
      %15 = sbr.rel target = $region3
    $region8: #{tpu_custom_call.1} parent=1 // loop_exit
      _
    %362 = vsyncpa [#allocation3], 1
    %s363 = scalar_lea.sflag [#allocation3], 1
    %364 = vsyncpa %s363, 1
    %365 = vsyncpa [#allocation6], 1
    %366 = vsyncpa [#allocation4], 1
    %s367 = scalar_lea.sflag [#allocation4], 1
    %368 = vsyncpa %s367, 1

</llo_original>
